<compile_context>
chip_gen: v7x
topology: tpu7x:2x2x1
jax: 0.10.0
libtpu: 0.0.40
codegen_flags: <defaults>
</compile_context>

<pallas_src>
import jax
import jax.numpy as jnp
from jax.experimental import pallas as pl
from jax.experimental.pallas import tpu as pltpu


def _round_up(n, m):
    return ((n + m - 1) // m) * m


def mlp_head_kernel(x_ref, w1_ref, b1_ref, w2_ref, b2_ref, w3_ref, b3_ref, o_ref):
    cdt = w1_ref.dtype  # MXU operand dtype (f32 or bf16)

    # Layer 1: (tile_b, D) @ (D, H) -> (tile_b, H); f32 accumulation, bias, ReLU.
    h1 = jnp.dot(x_ref[...], w1_ref[...], preferred_element_type=jnp.float32)
    h1 = jnp.maximum(h1 + b1_ref[...].astype(jnp.float32), 0.0)

    # Layer 2, transposed: W2_pt (H_out, H_in) contracted with h1 (tile_b, H_in)
    # over the feature axis -> (H_out, tile_b).  Batch lives on lanes from here on.
    h2t = jax.lax.dot_general(
        w2_ref[...], h1.astype(cdt),
        dimension_numbers=(((1,), (1,)), ((), ())),
        preferred_element_type=jnp.float32)
    h2t = jnp.maximum(h2t + b2_ref[...].astype(jnp.float32), 0.0)

    # Layer 3: (1, H) @ (H, tile_b) -> (1, tile_b) logit row; scalar bias from SMEM.
    z = jnp.dot(w3_ref[...], h2t.astype(cdt), preferred_element_type=jnp.float32)
    z = z + b3_ref[0, 0]

    o_ref[...] = jax.nn.sigmoid(z).astype(o_ref.dtype)


def classification_head_forward(x, params, *, tile_b_max=512):
    """x: (B, D) float-like.  Returns (B, 1) float32 probabilities."""
    w1, b1, w2, b2, w3, b3 = params
    assert tile_b_max % 128 == 0, "tile_b_max must be a multiple of 128"

    x = x.astype(w1.dtype)  # mirrors `similarity.type(self.mlp[0].weight.dtype)`
    B, D = x.shape
    H = w1.shape[1]

    # Batch tile: one tile (padded to a multiple of 8) for small batches,
    # 128-multiple tiles otherwise.  Pad B so the grid divides evenly.
    b8 = _round_up(max(B, 1), 8)
    tile_b = b8 if b8 <= tile_b_max else tile_b_max
    Bp = _round_up(B, tile_b)
    if Bp != B:
        x = jnp.pad(x, ((0, Bp - B), (0, 0)))

    grid = (Bp // tile_b,)
    b3_smem = b3.astype(jnp.float32).reshape(1, 1)

    out_row = pl.pallas_call(
        mlp_head_kernel,
        out_shape=jax.ShapeDtypeStruct((1, Bp), jnp.float32),
        grid_spec=pltpu.PrefetchScalarGridSpec(
            num_scalar_prefetch=0,
            grid=grid,
            in_specs=[
                pl.BlockSpec((tile_b, D), lambda i: (i, 0)),        # x tile
                pl.BlockSpec((D, H), lambda i: (0, 0)),             # W1 (in, out)
                pl.BlockSpec((1, H), lambda i: (0, 0)),             # b1 row
                pl.BlockSpec((H, H), lambda i: (0, 0)),             # W2 (out, in)
                pl.BlockSpec((H, 1), lambda i: (0, 0)),             # b2 column
                pl.BlockSpec((1, H), lambda i: (0, 0)),             # W3 (out=1, in)
                pl.BlockSpec(memory_space=pltpu.MemorySpace.SMEM),  # b3 scalar
            ],
            out_specs=pl.BlockSpec((1, tile_b), lambda i: (0, i)),  # lane-dense row
        ),
        compiler_params=pltpu.CompilerParams(
            dimension_semantics=("parallel",),
            vmem_limit_bytes=32 * 1024 * 1024,
        ),
    )(x, w1, b1, w2, b2, w3, b3_smem)

    return out_row.reshape(Bp, 1)[:B]


def init_params(key, projection_size, hidden_size, dtype=jnp.float32):
    """nn.Linear-style init (uniform +-1/sqrt(fan_in)), stored in kernel layouts:
       w1: (D, H) = W1_pt.T   b1: (1, H)
       w2: (H, H) = W2_pt     b2: (H, 1)
       w3: (1, H) = W3_pt     b3: (1, 1)
    """
    def linear_init(k, fan_in, fan_out):
        kw, kb = jax.random.split(k)
        bound = 1.0 / jnp.sqrt(fan_in)
        w_pt = jax.random.uniform(kw, (fan_out, fan_in), jnp.float32, -bound, bound)
        b = jax.random.uniform(kb, (fan_out,), jnp.float32, -bound, bound)
        return w_pt, b

    k1, k2, k3 = jax.random.split(key, 3)
    w1_pt, b1 = linear_init(k1, projection_size, hidden_size)
    w2_pt, b2 = linear_init(k2, hidden_size, hidden_size)
    w3_pt, b3 = linear_init(k3, hidden_size, 1)
    params = (
        w1_pt.T, b1.reshape(1, hidden_size),
        w2_pt, b2.reshape(hidden_size, 1),
        w3_pt, b3.reshape(1, 1),
    )
    return tuple(p.astype(dtype) for p in params)


def reference_forward(x, params):
    """Pure-JAX reference matching the PyTorch module."""
    w1, b1, w2, b2, w3, b3 = params
    x = x.astype(w1.dtype)
    h1 = jnp.maximum(x @ w1 + b1, 0.0)
    h2 = jnp.maximum(h1 @ w2.T + b2.reshape(1, -1), 0.0)
    z = h2 @ w3.T + b3.reshape(1, 1)
    return jax.nn.sigmoid(z.astype(jnp.float32))


if __name__ == "__main__":
    # projection_size from CLIP ViT-B text_projection; hidden size fixed by module.
    PROJECTION_SIZE = 512
    HIDDEN_SIZE = 128

    key = jax.random.PRNGKey(0)
    k_params, k_x1, k_x2 = jax.random.split(key, 3)
    params = init_params(k_params, PROJECTION_SIZE, HIDDEN_SIZE)

    # Case 1: multi-tile f32 (grid of 3 parallel steps -> shardable across v7x TCs).
    x1 = jax.random.normal(k_x1, (384, PROJECTION_SIZE), dtype=jnp.float32)
    out1 = jax.block_until_ready(classification_head_forward(x1, params, tile_b_max=128))
    ref1 = reference_forward(x1, params)
    assert out1.shape == (384, 1), out1.shape
    assert jnp.allclose(out1, ref1, atol=2e-5, rtol=2e-5), "f32 multi-tile mismatch"

    # Case 2: ragged batch (not a tile multiple) exercises the padding path.
    x2 = jax.random.normal(k_x2, (100, PROJECTION_SIZE), dtype=jnp.float32)
    out2 = jax.block_until_ready(classification_head_forward(x2, params))
    ref2 = reference_forward(x2, params)
    assert out2.shape == (100, 1), out2.shape
    assert jnp.allclose(out2, ref2, atol=2e-5, rtol=2e-5), "f32 ragged-batch mismatch"

    # Case 3: bf16 weights/activations (halved HBM traffic, bf16-native MXU),
    # f32 accumulation inside the kernel.
    params_bf16 = jax.tree_util.tree_map(lambda p: p.astype(jnp.bfloat16), params)
    out3 = jax.block_until_ready(
        classification_head_forward(x1, params_bf16, tile_b_max=128))
    ref3 = reference_forward(x1, params_bf16)
    assert out3.shape == (384, 1), out3.shape
    assert jnp.allclose(out3, ref3, atol=3e-2, rtol=3e-2), "bf16 mismatch"

    print("KERNEL_OK")
</pallas_src>

<mosaic_0001>
module attributes {stable_mosaic.version = 11 : i64} {
  func.func @mlp_head_kernel(%arg0: i32, %arg1: memref<128x512xf32, #tpu.memory_space<vmem>>, %arg2: memref<512x128xf32, #tpu.memory_space<vmem>>, %arg3: memref<1x128xf32, #tpu.memory_space<vmem>>, %arg4: memref<128x128xf32, #tpu.memory_space<vmem>>, %arg5: memref<128x1xf32, #tpu.memory_space<vmem>>, %arg6: memref<1x128xf32, #tpu.memory_space<vmem>>, %arg7: memref<1x1xf32, #tpu.memory_space<smem>>, %arg8: memref<1x128xf32, #tpu.memory_space<vmem>>) attributes {dimension_semantics = [#tpu.dimension_semantics<parallel>], iteration_bounds = array<i64: 3>, scalar_prefetch = 0 : i64, scratch_operands = 0 : i64, tpu.core_type = #tpu.core_type<tc>, window_params = [{transform_indices = @transform_0, window_bounds = array<i64: 128, 512>}, {pipeline_mode = #tpu.pipeline_mode<synchronous>, transform_indices = @transform_1, window_bounds = array<i64: 512, 128>}, {pipeline_mode = #tpu.pipeline_mode<synchronous>, transform_indices = @transform_2, window_bounds = array<i64: 1, 128>}, {pipeline_mode = #tpu.pipeline_mode<synchronous>, transform_indices = @transform_3, window_bounds = array<i64: 128, 128>}, {pipeline_mode = #tpu.pipeline_mode<synchronous>, transform_indices = @transform_4, window_bounds = array<i64: 128, 1>}, {pipeline_mode = #tpu.pipeline_mode<synchronous>, transform_indices = @transform_5, window_bounds = array<i64: 1, 128>}, {transform_indices = @transform_6, window_bounds = array<i64: 1, 1>}, {transform_indices = @transform_7, window_bounds = array<i64: 1, 128>}]} {
    %c0 = arith.constant 0 : index
    %c0_0 = arith.constant 0 : index
    %0 = vector.load %arg1[%c0, %c0_0] : memref<128x512xf32, #tpu.memory_space<vmem>>, vector<128x512xf32>
    %c0_1 = arith.constant 0 : index
    %c0_2 = arith.constant 0 : index
    %1 = vector.load %arg2[%c0_1, %c0_2] : memref<512x128xf32, #tpu.memory_space<vmem>>, vector<512x128xf32>
    %cst = arith.constant dense<0.000000e+00> : vector<128x128xf32>
    %2 = tpu.matmul %0, %1, %cst {dimension_numbers = #tpu.dot_dimension_numbers<[1], [0], [0], [1], [0, 0, 1, 1], [], []>} : vector<128x512xf32>, vector<512x128xf32>, vector<128x128xf32> -> vector<128x128xf32>
    %c0_3 = arith.constant 0 : index
    %c0_4 = arith.constant 0 : index
    %3 = vector.load %arg3[%c0_3, %c0_4] : memref<1x128xf32, #tpu.memory_space<vmem>>, vector<1x128xf32>
    %4 = vector.broadcast %3 : vector<1x128xf32> to vector<128x128xf32>
    %5 = arith.addf %2, %4 : vector<128x128xf32>
    %cst_5 = arith.constant 0.000000e+00 : f32
    %6 = vector.broadcast %cst_5 : f32 to vector<128x128xf32>
    %7 = arith.maximumf %5, %6 : vector<128x128xf32>
    %c0_6 = arith.constant 0 : index
    %c0_7 = arith.constant 0 : index
    %8 = vector.load %arg4[%c0_6, %c0_7] : memref<128x128xf32, #tpu.memory_space<vmem>>, vector<128x128xf32>
    %cst_8 = arith.constant dense<0.000000e+00> : vector<128x128xf32>
    %9 = tpu.matmul %8, %7, %cst_8 {dimension_numbers = #tpu.dot_dimension_numbers<[1], [1], [0], [0], [0, 0, 1, 0], [], []>} : vector<128x128xf32>, vector<128x128xf32>, vector<128x128xf32> -> vector<128x128xf32>
    %c0_9 = arith.constant 0 : index
    %c0_10 = arith.constant 0 : index
    %10 = vector.load %arg5[%c0_9, %c0_10] : memref<128x1xf32, #tpu.memory_space<vmem>>, vector<128x1xf32>
    %11 = vector.broadcast %10 : vector<128x1xf32> to vector<128x128xf32>
    %12 = arith.addf %9, %11 : vector<128x128xf32>
    %cst_11 = arith.constant 0.000000e+00 : f32
    %13 = vector.broadcast %cst_11 : f32 to vector<128x128xf32>
    %14 = arith.maximumf %12, %13 : vector<128x128xf32>
    %c0_12 = arith.constant 0 : index
    %c0_13 = arith.constant 0 : index
    %15 = vector.load %arg6[%c0_12, %c0_13] : memref<1x128xf32, #tpu.memory_space<vmem>>, vector<1x128xf32>
    %cst_14 = arith.constant dense<0.000000e+00> : vector<1x128xf32>
    %16 = tpu.matmul %15, %14, %cst_14 {dimension_numbers = #tpu.dot_dimension_numbers<[1], [0], [0], [1], [0, 0, 1, 1], [], []>} : vector<1x128xf32>, vector<128x128xf32>, vector<1x128xf32> -> vector<1x128xf32>
    %c0_15 = arith.constant 0 : index
    %c0_16 = arith.constant 0 : index
    %17 = memref.load %arg7[%c0_15, %c0_16] : memref<1x1xf32, #tpu.memory_space<smem>>
    %18 = vector.broadcast %17 : f32 to vector<1x128xf32>
    %19 = arith.addf %16, %18 : vector<1x128xf32>
    %20 = arith.negf %19 : vector<1x128xf32>
    %21 = math.exp %20 : vector<1x128xf32>
    %cst_17 = arith.constant 1.000000e+00 : f32
    %22 = vector.broadcast %cst_17 : f32 to vector<1x128xf32>
    %23 = arith.addf %22, %21 : vector<1x128xf32>
    %24 = arith.divf %22, %23 : vector<1x128xf32>
    %c0_18 = arith.constant 0 : index
    %c0_19 = arith.constant 0 : index
    %25 = vector.load %arg8[%c0_18, %c0_19] : memref<1x128xf32, #tpu.memory_space<vmem>>, vector<1x128xf32>
    tpu.vector_store %arg8[%c0_18, %c0_19], %24 {strides = array<i32>} : memref<1x128xf32, #tpu.memory_space<vmem>>, vector<1x128xf32>,
    return
  }
  func.func @transform_0(%arg0: i32) -> (i32, i32) {
    %c0_i32 = arith.constant 0 : i32
    %c0_i32_0 = arith.constant 0 : i32
    return %arg0, %c0_i32 : i32, i32
  }
  func.func @transform_1(%arg0: i32) -> (i32, i32) {
    %c0_i32 = arith.constant 0 : i32
    %c0_i32_0 = arith.constant 0 : i32
    %c0_i32_1 = arith.constant 0 : i32
    return %c0_i32, %c0_i32_0 : i32, i32
  }
  func.func @transform_2(%arg0: i32) -> (i32, i32) {
    %c0_i32 = arith.constant 0 : i32
    %c0_i32_0 = arith.constant 0 : i32
    %c0_i32_1 = arith.constant 0 : i32
    return %c0_i32, %c0_i32_0 : i32, i32
  }
  func.func @transform_3(%arg0: i32) -> (i32, i32) {
    %c0_i32 = arith.constant 0 : i32
    %c0_i32_0 = arith.constant 0 : i32
    %c0_i32_1 = arith.constant 0 : i32
    return %c0_i32, %c0_i32_0 : i32, i32
  }
  func.func @transform_4(%arg0: i32) -> (i32, i32) {
    %c0_i32 = arith.constant 0 : i32
    %c0_i32_0 = arith.constant 0 : i32
    %c0_i32_1 = arith.constant 0 : i32
    return %c0_i32, %c0_i32_0 : i32, i32
  }
  func.func @transform_5(%arg0: i32) -> (i32, i32) {
    %c0_i32 = arith.constant 0 : i32
    %c0_i32_0 = arith.constant 0 : i32
    %c0_i32_1 = arith.constant 0 : i32
    return %c0_i32, %c0_i32_0 : i32, i32
  }
  func.func @transform_6(%arg0: i32) -> (i32, i32) {
    %c0_i32 = arith.constant 0 : i32
    %c0_i32_0 = arith.constant 0 : i32
    %c0_i32_1 = arith.constant 0 : i32
    return %c0_i32, %c0_i32_0 : i32, i32
  }
  func.func @transform_7(%arg0: i32) -> (i32, i32) {
    %c0_i32 = arith.constant 0 : i32
    %c0_i32_0 = arith.constant 0 : i32
    return %c0_i32, %arg0 : i32, i32
  }
}

</mosaic_0001>

<llo_original>
// kernel: tpu_custom_call.1
$region0: #{tpu_custom_call.1}
  #allocation0 [shape = 'u32[]', space=smem, size = 0x4, offset = 0x4, fixed_abs, tag = 'smem constant byte address 0x4 - core index']
  #allocation1 [shape = 'u32[144,128]{1,0:T(1,128)}', space=vmem, size = 0x12000, scoped, tag = 'internal scratch']
  #allocation2 [shape = 'f32[1,1]{1,0:T(1,128)S(6)}', space=smem, size = 0x200, scoped, tag = 'scoped memory for tpu_custom_call.1']
  %s0 = inlined_call_operand.hbm [shape: f32[384,512], index: 0, kind: input, shape index: {}]
  %s1 = inlined_call_operand.hbm [shape: f32[512,128], index: 1, kind: input, shape index: {}]
  %s2 = inlined_call_operand.vmem [shape: f32[1,128], index: 2, kind: input, shape index: {}]
  %s3 = inlined_call_operand.vmem [shape: f32[128,128], index: 3, kind: input, shape index: {}]
  %s4 = inlined_call_operand.vmem [shape: f32[128,1], index: 4, kind: input, shape index: {}]
  %s5 = inlined_call_operand.vmem [shape: f32[1,128], index: 5, kind: input, shape index: {}]
  %s6 = inlined_call_operand.<no memory space> [shape: f32[1,1], index: 6, kind: input, shape index: {}]
  %s7 = inlined_call_operand.hbm [shape: f32[1,384], index: 7, kind: output, shape index: {}]
  %s8 = sld [smem:[#allocation0]]
  $region69: #{tpu_custom_call.1} parent=0
    _
  %s10 = ssub.s32 1, %s8
  %s11 = scalar_select 0, %s10, %s8
  %12 = sst [smem:[#allocation2]] %s6
  $region1: #{tpu_custom_call.1} parent=0
    #allocation3 [shape = 'u8[524288]{0}', space=vmem, size = 0x80000, scoped, tag = 'input window, operand 0']
    #allocation4 [shape = 's32[2]{0}', space=sflag, size = 0x8, scoped, tag = 'scoped memory for tpu_custom_call.1']
    #allocation5 [shape = 's32[2]{0}', space=sflag, size = 0x8, scoped, tag = 'scoped memory for tpu_custom_call.1']
    #allocation6 [shape = 'u8[262144]{0}', space=vmem, size = 0x40000, scoped, tag = 'input window, operand 1, single buffered']
    #allocation7 [shape = 's32[1]{0}', space=sflag, size = 0x4, scoped, tag = 'scoped memory for tpu_custom_call.1']
    #allocation8 [shape = 'u8[1024]{0}', space=vmem, size = 0x400, scoped, tag = 'output window, operand 0']
    %13 = vsyncpa [#allocation4], 0
    %s14 = scalar_lea.sflag [#allocation4], 1
    %15 = vsyncpa %s14, 0
    %16 = vsyncpa [#allocation7], 0
    %17 = vsyncpa [#allocation5], 0
    %s18 = scalar_lea.sflag [#allocation5], 1
    %19 = vsyncpa %s18, 0
    loop: start=0, step=1, limit=5
    $region2: #{tpu_custom_call.1} parent=1 // loop_pre_header
      _
    $region3: #{tpu_custom_call.1} parent=1 // loop_header
      %s21 = sphi 0, %s25
      %p22 = scmp.ge.s32.totalorder %s21, 5
      %s31 = sphi 0, %s33
      %s34 = sphi 0, %s31
      %s35 = sphi 0, %s34
      %s51 = sphi 0, %s35
      %s55 = sphi 0, %s55
      %s57 = sphi 0, %s55
      %s58 = sphi 0, %s57
      %s72 = sphi 0, %s58
      %s76 = sphi 0, %s76
      %s78 = sphi 0, %s76
      %s79 = sphi 0, %s78
      %s93 = sphi 0, %s79
      %s97 = sphi 0, %s97
      %s99 = sphi 0, %s97
      %s100 = sphi 0, %s99
      %s114 = sphi 0, %s100
      %s118 = sphi 0, %s118
      %s120 = sphi 0, %s118
      %s121 = sphi 0, %s120
      %s135 = sphi 0, %s121
      %s139 = sphi 0, %s139
      %s141 = sphi 0, %s139
      %s142 = sphi 0, %s141
      %s156 = sphi 0, %s142
      %s160 = sphi 0, %s160
      %s162 = sphi 0, %s160
      %s163 = sphi 0, %s162
      %s177 = sphi 0, %s163
      %s183 = sphi 0, %s185
      %s186 = sphi 0, %s183
      %s187 = sphi 0, %s186
      %s203 = sphi 0, %s187
    $region4: #{tpu_custom_call.1} parent=1 // loop_header_branch
      %24 = sbr.rel (%p22) target = $region8
    $region5: #{tpu_custom_call.1} parent=1 // loop_body
      %s26 = ssub.s32 %s21, 1
      %s27 = ssub.s32 %s21, 2
      %s28 = sadd.s32 %s21, 1
      %s29 = ssub.s32 %s21, %s28
      %p30 = scmp.eq.s32.totalorder %s29, 0
      %s32 = sadd.s32 %s31, 1
      %s33 = scalar_select %p30, %s31, %s32
      %p36 = pneg %p30
      %p37 = scmp.eq.s32.totalorder %s21, 2
      %p38 = por %p36, %p37
      %p39 = scmp.ne.s32.totalorder %s31, %s34
      %p40 = scmp.eq.s32.totalorder %s21, 0
      %p41 = por %p39, %p40
      %p42 = scmp.ne.s32.totalorder %s31, %s34
      %p43 = scmp.eq.s32.totalorder %s26, 2
      %p44 = por %p42, %p43
      %p45 = scmp.ne.s32.totalorder %s34, %s35
      %p46 = scmp.eq.s32.totalorder %s26, 0
      %p47 = por %p45, %p46
      %p48 = scmp.ne.s32.totalorder %s34, %s35
      %p49 = scmp.eq.s32.totalorder %s27, 2
      %p50 = por %p48, %p49
      %p52 = scmp.ne.s32.totalorder %s35, %s51
      %p53 = scmp.eq.s32.totalorder %s27, 0
      %p54 = por %p52, %p53
      %s56 = sadd.s32 %s55, 1
      %p59 = scmp.eq.s32.totalorder %s21, 2
      %p60 = scmp.ne.s32.totalorder %s55, %s57
      %p61 = scmp.eq.s32.totalorder %s21, 0
      %p62 = por %p60, %p61
      %p63 = scmp.ne.s32.totalorder %s55, %s57
      %p64 = scmp.eq.s32.totalorder %s26, 2
      %p65 = por %p63, %p64
      %p66 = scmp.ne.s32.totalorder %s57, %s58
      %p67 = scmp.eq.s32.totalorder %s26, 0
      %p68 = por %p66, %p67
      %p69 = scmp.ne.s32.totalorder %s57, %s58
      %p70 = scmp.eq.s32.totalorder %s27, 2
      %p71 = por %p69, %p70
      %p73 = scmp.ne.s32.totalorder %s58, %s72
      %p74 = scmp.eq.s32.totalorder %s27, 0
      %p75 = por %p73, %p74
      %s77 = sadd.s32 %s76, 1
      %p80 = scmp.eq.s32.totalorder %s21, 2
      %p81 = scmp.ne.s32.totalorder %s76, %s78
      %p82 = scmp.eq.s32.totalorder %s21, 0
      %p83 = por %p81, %p82
      %p84 = scmp.ne.s32.totalorder %s76, %s78
      %p85 = scmp.eq.s32.totalorder %s26, 2
      %p86 = por %p84, %p85
      %p87 = scmp.ne.s32.totalorder %s78, %s79
      %p88 = scmp.eq.s32.totalorder %s26, 0
      %p89 = por %p87, %p88
      %p90 = scmp.ne.s32.totalorder %s78, %s79
      %p91 = scmp.eq.s32.totalorder %s27, 2
      %p92 = por %p90, %p91
      %p94 = scmp.ne.s32.totalorder %s79, %s93
      %p95 = scmp.eq.s32.totalorder %s27, 0
      %p96 = por %p94, %p95
      %s98 = sadd.s32 %s97, 1
      %p101 = scmp.eq.s32.totalorder %s21, 2
      %p102 = scmp.ne.s32.totalorder %s97, %s99
      %p103 = scmp.eq.s32.totalorder %s21, 0
      %p104 = por %p102, %p103
      %p105 = scmp.ne.s32.totalorder %s97, %s99
      %p106 = scmp.eq.s32.totalorder %s26, 2
      %p107 = por %p105, %p106
      %p108 = scmp.ne.s32.totalorder %s99, %s100
      %p109 = scmp.eq.s32.totalorder %s26, 0
      %p110 = por %p108, %p109
      %p111 = scmp.ne.s32.totalorder %s99, %s100
      %p112 = scmp.eq.s32.totalorder %s27, 2
      %p113 = por %p111, %p112
      %p115 = scmp.ne.s32.totalorder %s100, %s114
      %p116 = scmp.eq.s32.totalorder %s27, 0
      %p117 = por %p115, %p116
      %s119 = sadd.s32 %s118, 1
      %p122 = scmp.eq.s32.totalorder %s21, 2
      %p123 = scmp.ne.s32.totalorder %s118, %s120
      %p124 = scmp.eq.s32.totalorder %s21, 0
      %p125 = por %p123, %p124
      %p126 = scmp.ne.s32.totalorder %s118, %s120
      %p127 = scmp.eq.s32.totalorder %s26, 2
      %p128 = por %p126, %p127
      %p129 = scmp.ne.s32.totalorder %s120, %s121
      %p130 = scmp.eq.s32.totalorder %s26, 0
      %p131 = por %p129, %p130
      %p132 = scmp.ne.s32.totalorder %s120, %s121
      %p133 = scmp.eq.s32.totalorder %s27, 2
      %p134 = por %p132, %p133
      %p136 = scmp.ne.s32.totalorder %s121, %s135
      %p137 = scmp.eq.s32.totalorder %s27, 0
      %p138 = por %p136, %p137
      %s140 = sadd.s32 %s139, 1
      %p143 = scmp.eq.s32.totalorder %s21, 2
      %p144 = scmp.ne.s32.totalorder %s139, %s141
      %p145 = scmp.eq.s32.totalorder %s21, 0
      %p146 = por %p144, %p145
      %p147 = scmp.ne.s32.totalorder %s139, %s141
      %p148 = scmp.eq.s32.totalorder %s26, 2
      %p149 = por %p147, %p148
      %p150 = scmp.ne.s32.totalorder %s141, %s142
      %p151 = scmp.eq.s32.totalorder %s26, 0
      %p152 = por %p150, %p151
      %p153 = scmp.ne.s32.totalorder %s141, %s142
      %p154 = scmp.eq.s32.totalorder %s27, 2
      %p155 = por %p153, %p154
      %p157 = scmp.ne.s32.totalorder %s142, %s156
      %p158 = scmp.eq.s32.totalorder %s27, 0
      %p159 = por %p157, %p158
      %s161 = sadd.s32 %s160, 1
      %p164 = scmp.eq.s32.totalorder %s21, 2
      %p165 = scmp.ne.s32.totalorder %s160, %s162
      %p166 = scmp.eq.s32.totalorder %s21, 0
      %p167 = por %p165, %p166
      %p168 = scmp.ne.s32.totalorder %s160, %s162
      %p169 = scmp.eq.s32.totalorder %s26, 2
      %p170 = por %p168, %p169
      %p171 = scmp.ne.s32.totalorder %s162, %s163
      %p172 = scmp.eq.s32.totalorder %s26, 0
      %p173 = por %p171, %p172
      %p174 = scmp.ne.s32.totalorder %s162, %s163
      %p175 = scmp.eq.s32.totalorder %s27, 2
      %p176 = por %p174, %p175
      %p178 = scmp.ne.s32.totalorder %s163, %s177
      %p179 = scmp.eq.s32.totalorder %s27, 0
      %p180 = por %p178, %p179
      %s181 = ssub.s32 %s21, %s28
      %p182 = scmp.eq.s32.totalorder %s181, 0
      %s184 = sadd.s32 %s183, 1
      %s185 = scalar_select %p182, %s183, %s184
      %p188 = pneg %p182
      %p189 = scmp.eq.s32.totalorder %s21, 2
      %p190 = por %p188, %p189
      %p191 = scmp.ne.s32.totalorder %s183, %s186
      %p192 = scmp.eq.s32.totalorder %s21, 0
      %p193 = por %p191, %p192
      %p194 = scmp.ne.s32.totalorder %s183, %s186
      %p195 = scmp.eq.s32.totalorder %s26, 2
      %p196 = por %p194, %p195
      %p197 = scmp.ne.s32.totalorder %s186, %s187
      %p198 = scmp.eq.s32.totalorder %s26, 0
      %p199 = por %p197, %p198
      %p200 = scmp.ne.s32.totalorder %s186, %s187
      %p201 = scmp.eq.s32.totalorder %s27, 2
      %p202 = por %p200, %p201
      %p204 = scmp.ne.s32.totalorder %s187, %s203
      %p205 = scmp.eq.s32.totalorder %s27, 0
      %p206 = por %p204, %p205
      %p207 = scmp.le.s32.totalorder 1, %s21
      %p208 = scmp.lt.s32.totalorder %s21, 4
      %p209 = pnand %p207, %p208
      %p210 = pneg %p209
      // Predicated region
      $region9: #{tpu_custom_call.1} parent=5 // pred_check
        _
      $region10: #{tpu_custom_call.1} parent=5 // pred_check_branch
        %212 = sbr.rel (%p209) target = $region12
      $region11: #{tpu_custom_call.1} parent=5 // pred_region
        %s213 = ssub.s32 %s21, 1
        // Predicated region
        $region13: #{tpu_custom_call.1} parent=11 // pred_check
          %p214 = pneg %p68
        $region14: #{tpu_custom_call.1} parent=11 // pred_check_branch
          %216 = sbr.rel (%p214) target = $region16
        $region15: #{tpu_custom_call.1} parent=11 // pred_region
          %s218 = ssub.s32 8192, 8192
          %219 = vsyncadd [#allocation7], %s218
          %s220 = sshll.u32 [#allocation6], 4
          %s221 = int_to_ptr.vmem [resolvable:$true] %s220
          %226 = dma.hbm_to_vmem [thread:$0]  %s1, 8192, %s221, [#allocation7], 128, 128, 8
        $region16: #{tpu_custom_call.1} parent=11 // pred_fallthru
          _
        // Predicated region
        $region17: #{tpu_custom_call.1} parent=11 // pred_check
          %p227 = pneg %p89
        $region18: #{tpu_custom_call.1} parent=11 // pred_check_branch
          %229 = sbr.rel (%p227) target = $region20
        $region19: #{tpu_custom_call.1} parent=11 // pred_region
          _
        $region20: #{tpu_custom_call.1} parent=11 // pred_fallthru
          _
        // Predicated region
        $region21: #{tpu_custom_call.1} parent=11 // pred_check
          %p230 = pneg %p110
        $region22: #{tpu_custom_call.1} parent=11 // pred_check_branch
          %232 = sbr.rel (%p230) target = $region24
        $region23: #{tpu_custom_call.1} parent=11 // pred_region
          _
        $region24: #{tpu_custom_call.1} parent=11 // pred_fallthru
          _
        // Predicated region
        $region25: #{tpu_custom_call.1} parent=11 // pred_check
          %p233 = pneg %p131
        $region26: #{tpu_custom_call.1} parent=11 // pred_check_branch
          %235 = sbr.rel (%p233) target = $region28
        $region27: #{tpu_custom_call.1} parent=11 // pred_region
          _
        $region28: #{tpu_custom_call.1} parent=11 // pred_fallthru
          _
        // Predicated region
        $region29: #{tpu_custom_call.1} parent=11 // pred_check
          %p236 = pneg %p152
        $region30: #{tpu_custom_call.1} parent=11 // pred_check_branch
          %238 = sbr.rel (%p236) target = $region32
        $region31: #{tpu_custom_call.1} parent=11 // pred_region
          _
        $region32: #{tpu_custom_call.1} parent=11 // pred_fallthru
          _
        // Predicated region
        $region33: #{tpu_custom_call.1} parent=11 // pred_check
          %p239 = pneg %p173
        $region34: #{tpu_custom_call.1} parent=11 // pred_check_branch
          %241 = sbr.rel (%p239) target = $region36
        $region35: #{tpu_custom_call.1} parent=11 // pred_region
          _
        $region36: #{tpu_custom_call.1} parent=11 // pred_fallthru
          _
      $region12: #{tpu_custom_call.1} parent=5 // pred_fallthru
        _
      %p242 = scmp.lt.s32.totalorder %s21, 3
      // Predicated region
      $region37: #{tpu_custom_call.1} parent=5 // pred_check
        %p243 = pneg %p242
      $region38: #{tpu_custom_call.1} parent=5 // pred_check_branch
        %245 = sbr.rel (%p243) target = $region40
      $region39: #{tpu_custom_call.1} parent=5 // pred_region
        // Predicated region
        $region41: #{tpu_custom_call.1} parent=39 // pred_check
          %p246 = pneg %p41
        $region42: #{tpu_custom_call.1} parent=39 // pred_check_branch
          %248 = sbr.rel (%p246) target = $region44
        $region43: #{tpu_custom_call.1} parent=39 // pred_region
          %s249 = sand.u32 %s31, 1
          %s250 = scalar_lea.sflag [#allocation4], %s249
          %s251 = sand.u32 %s31, 1
          %s252 = smul.addr %s251, 512
          %s253 = scalar_lea.vmem [#allocation3], %s252
          %s254 = smul.u32 16, %s21
          %s256 = ssub.s32 8192, 8192
          %257 = vsyncadd %s250, %s256
          %s258 = smul.addr %s254, 4
          %s259 = smul.addr %s258, 128
          %s260 = scalar_lea.hbm %s0, %s259
          %s261 = sshll.u32 %s253, 4
          %s262 = int_to_ptr.vmem [resolvable:$true] %s261
          %267 = dma.hbm_to_vmem [thread:$0]  %s260, 8192, %s262, %s250, 512, 512, 32
        $region44: #{tpu_custom_call.1} parent=39 // pred_fallthru
          _
      $region40: #{tpu_custom_call.1} parent=5 // pred_fallthru
        _
      %p268 = scmp.le.s32.totalorder 1, %s21
      %p269 = scmp.lt.s32.totalorder %s21, 4
      %p270 = pnand %p268, %p269
      %p271 = pneg %p270
      // Predicated region
      $region45: #{tpu_custom_call.1} parent=5 // pred_check
        _
      $region46: #{tpu_custom_call.1} parent=5 // pred_check_branch
        %273 = sbr.rel (%p270) target = $region48
      $region47: #{tpu_custom_call.1} parent=5 // pred_region
        %s274 = ssub.s32 %s21, 1
        %s275 = sand.u32 %s34, 1
        %s276 = scalar_lea.sflag [#allocation4], %s275
        %s277 = sand.u32 %s34, 1
        %s278 = smul.addr %s277, 512
        %s279 = scalar_lea.vmem [#allocation3], %s278
        // Predicated region
        $region49: #{tpu_custom_call.1} parent=47 // pred_check
          %p280 = pneg %p47
        $region50: #{tpu_custom_call.1} parent=47 // pred_check_branch
          %282 = sbr.rel (%p280) target = $region52
        $region51: #{tpu_custom_call.1} parent=47 // pred_region
          %283 = dma.done %s276, 8192
        $region52: #{tpu_custom_call.1} parent=47 // pred_fallthru
          _
        // Predicated region
        $region53: #{tpu_custom_call.1} parent=47 // pred_check
          %p284 = pneg %p68
        $region54: #{tpu_custom_call.1} parent=47 // pred_check_branch
          %286 = sbr.rel (%p284) target = $region56
        $region55: #{tpu_custom_call.1} parent=47 // pred_region
          %287 = dma.done [#allocation7], 8192
        $region56: #{tpu_custom_call.1} parent=47 // pred_fallthru
          _
        %s288 = sand.u32 %s34, 1
        %s289 = scalar_lea.sflag [#allocation4], %s288
        %s290 = sand.u32 %s34, 1
        %s291 = smul.addr %s290, 512
        %s292 = scalar_lea.vmem [#allocation3], %s291
        %p293 = pneg %p47
        %p294 = pneg %p44
        %p295 = pneg %p68
        %p296 = pneg %p65
        %p297 = pneg %p89
        %p298 = pneg %p86
        %p299 = pneg %p110
        %p300 = pneg %p107
        %p301 = pneg %p131
        %p302 = pneg %p128
        %p303 = pneg %p152
        %p304 = pneg %p149
        %p305 = pneg %p173
        %p306 = pneg %p170
        %p307 = pneg %p199
        %p308 = pneg %p196
        %s309 = sand.u32 %s186, 1
        %s310 = scalar_lea.sflag [#allocation5], %s309
        %s311 = sand.u32 %s186, 1
        %s312 = scalar_lea.vmem [#allocation8], %s311
        %s313 = smul.u32 16, %s26
        %v314 = vld [vmem:[%s279] sm:$0xff]
        %v315 = vld [vmem:[%s279 + $0x8] sm:$0xff]
        %v316 = vld [vmem:[%s279 + $0x10] sm:$0xff]
        %v317 = vld [vmem:[%s279 + $0x18] sm:$0xff]
        %v318 = vld [vmem:[%s279 + $0x20] sm:$0xff]
        %v319 = vld [vmem:[%s279 + $0x28] sm:$0xff]
        %v320 = vld [vmem:[%s279 + $0x30] sm:$0xff]
        %v321 = vld [vmem:[%s279 + $0x38] sm:$0xff]
        %v322 = vld [vmem:[%s279 + $0x40] sm:$0xff]
        %v323 = vld [vmem:[%s279 + $0x48] sm:$0xff]
        %v324 = vld [vmem:[%s279 + $0x50] sm:$0xff]
        %v325 = vld [vmem:[%s279 + $0x58] sm:$0xff]
        %v326 = vld [vmem:[%s279 + $0x60] sm:$0xff]
        %v327 = vld [vmem:[%s279 + $0x68] sm:$0xff]
        %v328 = vld [vmem:[%s279 + $0x70] sm:$0xff]
        %v329 = vld [vmem:[%s279 + $0x78] sm:$0xff]
        %v330 = vld [vmem:[%s279 + $0x80] sm:$0xff]
        %v331 = vld [vmem:[%s279 + $0x88] sm:$0xff]
        %v332 = vld [vmem:[%s279 + $0x90] sm:$0xff]
        %v333 = vld [vmem:[%s279 + $0x98] sm:$0xff]
        %v334 = vld [vmem:[%s279 + $0xa0] sm:$0xff]
        %v335 = vld [vmem:[%s279 + $0xa8] sm:$0xff]
        %v336 = vld [vmem:[%s279 + $0xb0] sm:$0xff]
        %v337 = vld [vmem:[%s279 + $0xb8] sm:$0xff]
        %v338 = vld [vmem:[%s279 + $0xc0] sm:$0xff]
        %v339 = vld [vmem:[%s279 + $0xc8] sm:$0xff]
        %v340 = vld [vmem:[%s279 + $0xd0] sm:$0xff]
        %v341 = vld [vmem:[%s279 + $0xd8] sm:$0xff]
        %v342 = vld [vmem:[%s279 + $0xe0] sm:$0xff]
        %v343 = vld [vmem:[%s279 + $0xe8] sm:$0xff]
        %v344 = vld [vmem:[%s279 + $0xf0] sm:$0xff]
        %v345 = vld [vmem:[%s279 + $0xf8] sm:$0xff]
        %v346 = vld [vmem:[%s279 + $0x100] sm:$0xff]
        %v347 = vld [vmem:[%s279 + $0x108] sm:$0xff]
        %v348 = vld [vmem:[%s279 + $0x110] sm:$0xff]
        %v349 = vld [vmem:[%s279 + $0x118] sm:$0xff]
        %v350 = vld [vmem:[%s279 + $0x120] sm:$0xff]
        %v351 = vld [vmem:[%s279 + $0x128] sm:$0xff]
        %v352 = vld [vmem:[%s279 + $0x130] sm:$0xff]
        %v353 = vld [vmem:[%s279 + $0x138] sm:$0xff]
        %v354 = vld [vmem:[%s279 + $0x140] sm:$0xff]
        %v355 = vld [vmem:[%s279 + $0x148] sm:$0xff]
        %v356 = vld [vmem:[%s279 + $0x150] sm:$0xff]
        %v357 = vld [vmem:[%s279 + $0x158] sm:$0xff]
        %v358 = vld [vmem:[%s279 + $0x160] sm:$0xff]
        %v359 = vld [vmem:[%s279 + $0x168] sm:$0xff]
        %v360 = vld [vmem:[%s279 + $0x170] sm:$0xff]
        %v361 = vld [vmem:[%s279 + $0x178] sm:$0xff]
        %v362 = vld [vmem:[%s279 + $0x180] sm:$0xff]
        %v363 = vld [vmem:[%s279 + $0x188] sm:$0xff]
        %v364 = vld [vmem:[%s279 + $0x190] sm:$0xff]
        %v365 = vld [vmem:[%s279 + $0x198] sm:$0xff]
        %v366 = vld [vmem:[%s279 + $0x1a0] sm:$0xff]
        %v367 = vld [vmem:[%s279 + $0x1a8] sm:$0xff]
        %v368 = vld [vmem:[%s279 + $0x1b0] sm:$0xff]
        %v369 = vld [vmem:[%s279 + $0x1b8] sm:$0xff]
        %v370 = vld [vmem:[%s279 + $0x1c0] sm:$0xff]
        %v371 = vld [vmem:[%s279 + $0x1c8] sm:$0xff]
        %v372 = vld [vmem:[%s279 + $0x1d0] sm:$0xff]
        %v373 = vld [vmem:[%s279 + $0x1d8] sm:$0xff]
        %v374 = vld [vmem:[%s279 + $0x1e0] sm:$0xff]
        %v375 = vld [vmem:[%s279 + $0x1e8] sm:$0xff]
        %v376 = vld [vmem:[%s279 + $0x1f0] sm:$0xff]
        %v377 = vld [vmem:[%s279 + $0x1f8] sm:$0xff]
        %v378 = vld [vmem:[#allocation6] sm:$0xff]
        %v379 = vld [vmem:[#allocation6 + $0x8] sm:$0xff]
        %v380 = vld [vmem:[#allocation6 + $0x10] sm:$0xff]
        %v381 = vld [vmem:[#allocation6 + $0x18] sm:$0xff]
        %v382 = vld [vmem:[#allocation6 + $0x20] sm:$0xff]
        %v383 = vld [vmem:[#allocation6 + $0x28] sm:$0xff]
        %v384 = vld [vmem:[#allocation6 + $0x30] sm:$0xff]
        %v385 = vld [vmem:[#allocation6 + $0x38] sm:$0xff]
        %v386 = vld [vmem:[#allocation6 + $0x40] sm:$0xff]
        %v387 = vld [vmem:[#allocation6 + $0x48] sm:$0xff]
        %v388 = vld [vmem:[#allocation6 + $0x50] sm:$0xff]
        %v389 = vld [vmem:[#allocation6 + $0x58] sm:$0xff]
        %v390 = vld [vmem:[#allocation6 + $0x60] sm:$0xff]
        %v391 = vld [vmem:[#allocation6 + $0x68] sm:$0xff]
        %v392 = vld [vmem:[#allocation6 + $0x70] sm:$0xff]
        %v393 = vld [vmem:[#allocation6 + $0x78] sm:$0xff]
        %v394 = vld [vmem:[#allocation6 + $0x80] sm:$0xff]
        %v395 = vld [vmem:[#allocation6 + $0x88] sm:$0xff]
        %v396 = vld [vmem:[#allocation6 + $0x90] sm:$0xff]
        %v397 = vld [vmem:[#allocation6 + $0x98] sm:$0xff]
        %v398 = vld [vmem:[#allocation6 + $0xa0] sm:$0xff]
        %v399 = vld [vmem:[#allocation6 + $0xa8] sm:$0xff]
        %v400 = vld [vmem:[#allocation6 + $0xb0] sm:$0xff]
        %v401 = vld [vmem:[#allocation6 + $0xb8] sm:$0xff]
        %v402 = vld [vmem:[#allocation6 + $0xc0] sm:$0xff]
        %v403 = vld [vmem:[#allocation6 + $0xc8] sm:$0xff]
        %v404 = vld [vmem:[#allocation6 + $0xd0] sm:$0xff]
        %v405 = vld [vmem:[#allocation6 + $0xd8] sm:$0xff]
        %v406 = vld [vmem:[#allocation6 + $0xe0] sm:$0xff]
        %v407 = vld [vmem:[#allocation6 + $0xe8] sm:$0xff]
        %v408 = vld [vmem:[#allocation6 + $0xf0] sm:$0xff]
        %v409 = vld [vmem:[#allocation6 + $0xf8] sm:$0xff]
        %v410 = vld [vmem:[#allocation6 + $0x100] sm:$0xff]
        %v411 = vld [vmem:[#allocation6 + $0x108] sm:$0xff]
        %v412 = vld [vmem:[#allocation6 + $0x110] sm:$0xff]
        %v413 = vld [vmem:[#allocation6 + $0x118] sm:$0xff]
        %v414 = vld [vmem:[#allocation6 + $0x120] sm:$0xff]
        %v415 = vld [vmem:[#allocation6 + $0x128] sm:$0xff]
        %v416 = vld [vmem:[#allocation6 + $0x130] sm:$0xff]
        %v417 = vld [vmem:[#allocation6 + $0x138] sm:$0xff]
        %v418 = vld [vmem:[#allocation6 + $0x140] sm:$0xff]
        %v419 = vld [vmem:[#allocation6 + $0x148] sm:$0xff]
        %v420 = vld [vmem:[#allocation6 + $0x150] sm:$0xff]
        %v421 = vld [vmem:[#allocation6 + $0x158] sm:$0xff]
        %v422 = vld [vmem:[#allocation6 + $0x160] sm:$0xff]
        %v423 = vld [vmem:[#allocation6 + $0x168] sm:$0xff]
        %v424 = vld [vmem:[#allocation6 + $0x170] sm:$0xff]
        %v425 = vld [vmem:[#allocation6 + $0x178] sm:$0xff]
        %v426 = vld [vmem:[#allocation6 + $0x180] sm:$0xff]
        %v427 = vld [vmem:[#allocation6 + $0x188] sm:$0xff]
        %v428 = vld [vmem:[#allocation6 + $0x190] sm:$0xff]
        %v429 = vld [vmem:[#allocation6 + $0x198] sm:$0xff]
        %v430 = vld [vmem:[#allocation6 + $0x1a0] sm:$0xff]
        %v431 = vld [vmem:[#allocation6 + $0x1a8] sm:$0xff]
        %v432 = vld [vmem:[#allocation6 + $0x1b0] sm:$0xff]
        %v433 = vld [vmem:[#allocation6 + $0x1b8] sm:$0xff]
        %v434 = vld [vmem:[#allocation6 + $0x1c0] sm:$0xff]
        %v435 = vld [vmem:[#allocation6 + $0x1c8] sm:$0xff]
        %v436 = vld [vmem:[#allocation6 + $0x1d0] sm:$0xff]
        %v437 = vld [vmem:[#allocation6 + $0x1d8] sm:$0xff]
        %v438 = vld [vmem:[#allocation6 + $0x1e0] sm:$0xff]
        %v439 = vld [vmem:[#allocation6 + $0x1e8] sm:$0xff]
        %v440 = vld [vmem:[#allocation6 + $0x1f0] sm:$0xff]
        %v441 = vld [vmem:[#allocation6 + $0x1f8] sm:$0xff]
        %v442 = vld [vmem:[%s2] sm:$0x1]
        %v444 = vlaneseq
        %v445 = vshrl.u32 %v444, 7
        %v446 = vsub.s32 0, %v445
        %v447 = vrot.slane %v442, %v446
        %449 = vmatprep.subr.mxu0 0.0
        %450 = vmatpush1.msra.mxu0 %v378
        %451 = vmatprep.subr.mxu0 0.0
        %452 = vmatpush1.msra.mxu0 %v379
        %453 = vmatprep.subr.mxu0 0.0
        %454 = vmatpush1.msra.mxu0 %v380
        %455 = vmatprep.subr.mxu0 0.0
        %456 = vmatpush1.msra.mxu0 %v381
        %457 = vmatprep.subr.mxu0 0.0
        %458 = vmatpush1.msra.mxu0 %v382
        %459 = vmatprep.subr.mxu0 0.0
        %460 = vmatpush1.msra.mxu0 %v383
        %461 = vmatprep.subr.mxu0 0.0
        %462 = vmatpush1.msra.mxu0 %v384
        %463 = vmatprep.subr.mxu0 0.0
        %464 = vmatpush1.msra.mxu0 %v385
        %465 = vmatprep.subr.mxu0 0.0
        %466 = vmatpush1.msra.mxu0 %v386
        %467 = vmatprep.subr.mxu0 0.0
        %468 = vmatpush1.msra.mxu0 %v387
        %469 = vmatprep.subr.mxu0 0.0
        %470 = vmatpush1.msra.mxu0 %v388
        %471 = vmatprep.subr.mxu0 0.0
        %472 = vmatpush1.msra.mxu0 %v389
        %473 = vmatprep.subr.mxu0 0.0
        %474 = vmatpush1.msra.mxu0 %v390
        %475 = vmatprep.subr.mxu0 0.0
        %476 = vmatpush1.msra.mxu0 %v391
        %477 = vmatprep.subr.mxu0 0.0
        %478 = vmatpush1.msra.mxu0 %v392
        %479 = vmatprep.subr.mxu0 0.0
        %480 = vmatpush1.msra.mxu0 %v393
        %481 = vmatprep.subr.mxu0 0.0
        %482 = vmatpush1.msra.mxu0 %v394
        %483 = vmatprep.subr.mxu0 0.0
        %484 = vmatpush1.msra.mxu0 %v395
        %485 = vmatprep.subr.mxu0 0.0
        %486 = vmatpush1.msra.mxu0 %v396
        %487 = vmatprep.subr.mxu0 0.0
        %488 = vmatpush1.msra.mxu0 %v397
        %489 = vmatprep.subr.mxu0 0.0
        %490 = vmatpush1.msra.mxu0 %v398
        %491 = vmatprep.subr.mxu0 0.0
        %492 = vmatpush1.msra.mxu0 %v399
        %493 = vmatprep.subr.mxu0 0.0
        %494 = vmatpush1.msra.mxu0 %v400
        %495 = vmatprep.subr.mxu0 0.0
        %496 = vmatpush1.msra.mxu0 %v401
        %497 = vmatprep.subr.mxu0 0.0
        %498 = vmatpush1.msra.mxu0 %v402
        %499 = vmatprep.subr.mxu0 0.0
        %500 = vmatpush1.msra.mxu0 %v403
        %501 = vmatprep.subr.mxu0 0.0
        %502 = vmatpush1.msra.mxu0 %v404
        %503 = vmatprep.subr.mxu0 0.0
        %504 = vmatpush1.msra.mxu0 %v405
        %505 = vmatprep.subr.mxu0 0.0
        %506 = vmatpush1.msra.mxu0 %v406
        %507 = vmatprep.subr.mxu0 0.0
        %508 = vmatpush1.msra.mxu0 %v407
        %509 = vmatprep.subr.mxu0 0.0
        %510 = vmatpush1.msra.mxu0 %v408
        %511 = vmatprep.subr.mxu0 0.0
        %512 = vmatpush1.msra.mxu0 %v409
        %513 = vmatprep.mubr.f32.mxu0 %v315
        %514 = vmatmul.mubr.f32.gmra.mrb[0].mxu0 %v314
        %v515 = vpop.f32.mrb[0].mxu0
        %v516 = vadd.f32 %v447, %v515
        %v517 = vpop.f32.mrb[0].mxu0
        %518 = vmatprep.mubr.f32.mxu0 %v319
        %519 = vmatmul.mubr.f32.gmra.mrb[0].mxu0 %v318
        %v520 = vpop.f32.mrb[0].mxu0
        %v521 = vadd.f32 %v447, %v520
        %v522 = vpop.f32.mrb[0].mxu0
        %523 = vmatprep.mubr.f32.mxu0 %v323
        %524 = vmatmul.mubr.f32.gmra.mrb[0].mxu0 %v322
        %v525 = vpop.f32.mrb[0].mxu0
        %v526 = vadd.f32 %v447, %v525
        %v527 = vpop.f32.mrb[0].mxu0
        %528 = vmatprep.mubr.f32.mxu0 %v327
        %529 = vmatmul.mubr.f32.gmra.mrb[0].mxu0 %v326
        %v530 = vpop.f32.mrb[0].mxu0
        %v531 = vadd.f32 %v447, %v530
        %v532 = vpop.f32.mrb[0].mxu0
        %533 = vmatprep.mubr.f32.mxu0 %v331
        %534 = vmatmul.mubr.f32.gmra.mrb[0].mxu0 %v330
        %v535 = vpop.f32.mrb[0].mxu0
        %v536 = vadd.f32 %v447, %v535
        %v537 = vpop.f32.mrb[0].mxu0
        %538 = vmatprep.mubr.f32.mxu0 %v335
        %539 = vmatmul.mubr.f32.gmra.mrb[0].mxu0 %v334
        %v540 = vpop.f32.mrb[0].mxu0
        %v541 = vadd.f32 %v447, %v540
        %v542 = vpop.f32.mrb[0].mxu0
        %543 = vmatprep.mubr.f32.mxu0 %v339
        %544 = vmatmul.mubr.f32.gmra.mrb[0].mxu0 %v338
        %v545 = vpop.f32.mrb[0].mxu0
        %v546 = vadd.f32 %v447, %v545
        %v547 = vpop.f32.mrb[0].mxu0
        %548 = vmatprep.mubr.f32.mxu0 %v343
        %549 = vmatmul.mubr.f32.gmra.mrb[0].mxu0 %v342
        %v550 = vpop.f32.mrb[0].mxu0
        %v551 = vadd.f32 %v447, %v550
        %v552 = vpop.f32.mrb[0].mxu0
        %553 = vmatprep.mubr.f32.mxu0 %v347
        %554 = vmatmul.mubr.f32.gmra.mrb[0].mxu0 %v346
        %v555 = vpop.f32.mrb[0].mxu0
        %v556 = vadd.f32 %v447, %v555
        %v557 = vpop.f32.mrb[0].mxu0
        %558 = vmatprep.mubr.f32.mxu0 %v351
        %559 = vmatmul.mubr.f32.gmra.mrb[0].mxu0 %v350
        %v560 = vpop.f32.mrb[0].mxu0
        %v561 = vadd.f32 %v447, %v560
        %v562 = vpop.f32.mrb[0].mxu0
        %563 = vmatprep.mubr.f32.mxu0 %v355
        %564 = vmatmul.mubr.f32.gmra.mrb[0].mxu0 %v354
        %v565 = vpop.f32.mrb[0].mxu0
        %v566 = vadd.f32 %v447, %v565
        %v567 = vpop.f32.mrb[0].mxu0
        %568 = vmatprep.mubr.f32.mxu0 %v359
        %569 = vmatmul.mubr.f32.gmra.mrb[0].mxu0 %v358
        %v570 = vpop.f32.mrb[0].mxu0
        %v571 = vadd.f32 %v447, %v570
        %v572 = vpop.f32.mrb[0].mxu0
        %573 = vmatprep.mubr.f32.mxu0 %v363
        %574 = vmatmul.mubr.f32.gmra.mrb[0].mxu0 %v362
        %v575 = vpop.f32.mrb[0].mxu0
        %v576 = vadd.f32 %v447, %v575
        %v577 = vpop.f32.mrb[0].mxu0
        %578 = vmatprep.mubr.f32.mxu0 %v367
        %579 = vmatmul.mubr.f32.gmra.mrb[0].mxu0 %v366
        %v580 = vpop.f32.mrb[0].mxu0
        %v581 = vadd.f32 %v447, %v580
        %v582 = vpop.f32.mrb[0].mxu0
        %583 = vmatprep.mubr.f32.mxu0 %v371
        %584 = vmatmul.mubr.f32.gmra.mrb[0].mxu0 %v370
        %v585 = vpop.f32.mrb[0].mxu0
        %v586 = vadd.f32 %v447, %v585
        %v587 = vpop.f32.mrb[0].mxu0
        %588 = vmatprep.mubr.f32.mxu0 %v375
        %589 = vmatmul.mubr.f32.gmra.mrb[0].mxu0 %v374
        %v590 = vpop.f32.mrb[0].mxu0
        %v591 = vadd.f32 %v447, %v590
        %v592 = vpop.f32.mrb[0].mxu0
        %593 = vdwg.mxu0
        %594 = vmatprep.subr.mxu0 0.0
        %595 = vmatpush1.msra.mxu0 %v410
        %596 = vmatprep.subr.mxu0 0.0
        %597 = vmatpush1.msra.mxu0 %v411
        %598 = vmatprep.subr.mxu0 0.0
        %599 = vmatpush1.msra.mxu0 %v412
        %600 = vmatprep.subr.mxu0 0.0
        %601 = vmatpush1.msra.mxu0 %v413
        %602 = vmatprep.subr.mxu0 0.0
        %603 = vmatpush1.msra.mxu0 %v414
        %604 = vmatprep.subr.mxu0 0.0
        %605 = vmatpush1.msra.mxu0 %v415
        %606 = vmatprep.subr.mxu0 0.0
        %607 = vmatpush1.msra.mxu0 %v416
        %608 = vmatprep.subr.mxu0 0.0
        %609 = vmatpush1.msra.mxu0 %v417
        %610 = vmatprep.subr.mxu0 0.0
        %611 = vmatpush1.msra.mxu0 %v418
        %612 = vmatprep.subr.mxu0 0.0
        %613 = vmatpush1.msra.mxu0 %v419
        %614 = vmatprep.subr.mxu0 0.0
        %615 = vmatpush1.msra.mxu0 %v420
        %616 = vmatprep.subr.mxu0 0.0
        %617 = vmatpush1.msra.mxu0 %v421
        %618 = vmatprep.subr.mxu0 0.0
        %619 = vmatpush1.msra.mxu0 %v422
        %620 = vmatprep.subr.mxu0 0.0
        %621 = vmatpush1.msra.mxu0 %v423
        %622 = vmatprep.subr.mxu0 0.0
        %623 = vmatpush1.msra.mxu0 %v424
        %624 = vmatprep.subr.mxu0 0.0
        %625 = vmatpush1.msra.mxu0 %v425
        %626 = vmatprep.subr.mxu0 0.0
        %627 = vmatpush1.msra.mxu0 %v426
        %628 = vmatprep.subr.mxu0 0.0
        %629 = vmatpush1.msra.mxu0 %v427
        %630 = vmatprep.subr.mxu0 0.0
        %631 = vmatpush1.msra.mxu0 %v428
        %632 = vmatprep.subr.mxu0 0.0
        %633 = vmatpush1.msra.mxu0 %v429
        %634 = vmatprep.subr.mxu0 0.0
        %635 = vmatpush1.msra.mxu0 %v430
        %636 = vmatprep.subr.mxu0 0.0
        %637 = vmatpush1.msra.mxu0 %v431
        %638 = vmatprep.subr.mxu0 0.0
        %639 = vmatpush1.msra.mxu0 %v432
        %640 = vmatprep.subr.mxu0 0.0
        %641 = vmatpush1.msra.mxu0 %v433
        %642 = vmatprep.subr.mxu0 0.0
        %643 = vmatpush1.msra.mxu0 %v434
        %644 = vmatprep.subr.mxu0 0.0
        %645 = vmatpush1.msra.mxu0 %v435
        %646 = vmatprep.subr.mxu0 0.0
        %647 = vmatpush1.msra.mxu0 %v436
        %648 = vmatprep.subr.mxu0 0.0
        %649 = vmatpush1.msra.mxu0 %v437
        %650 = vmatprep.subr.mxu0 0.0
        %651 = vmatpush1.msra.mxu0 %v438
        %652 = vmatprep.subr.mxu0 0.0
        %653 = vmatpush1.msra.mxu0 %v439
        %654 = vmatprep.subr.mxu0 0.0
        %655 = vmatpush1.msra.mxu0 %v440
        %656 = vmatprep.subr.mxu0 0.0
        %657 = vmatpush1.msra.mxu0 %v441
        %658 = vmatprep.mubr.f32.mxu0 %v317
        %659 = vmatmul.mubr.f32.gmra.mrb[0].mxu0 %v316
        %v660 = vpop.f32.mrb[0].mxu0
        %v661 = vadd.f32 %v516, %v660
        %v662 = vpop.f32.mrb[0].mxu0
        %663 = vmatprep.mubr.f32.mxu0 %v321
        %664 = vmatmul.mubr.f32.gmra.mrb[0].mxu0 %v320
        %v665 = vpop.f32.mrb[0].mxu0
        %v666 = vadd.f32 %v521, %v665
        %v667 = vpop.f32.mrb[0].mxu0
        %668 = vmatprep.mubr.f32.mxu0 %v325
        %669 = vmatmul.mubr.f32.gmra.mrb[0].mxu0 %v324
        %v670 = vpop.f32.mrb[0].mxu0
        %v671 = vadd.f32 %v526, %v670
        %v672 = vpop.f32.mrb[0].mxu0
        %673 = vmatprep.mubr.f32.mxu0 %v329
        %674 = vmatmul.mubr.f32.gmra.mrb[0].mxu0 %v328
        %v675 = vpop.f32.mrb[0].mxu0
        %v676 = vadd.f32 %v531, %v675
        %v677 = vpop.f32.mrb[0].mxu0
        %678 = vmatprep.mubr.f32.mxu0 %v333
        %679 = vmatmul.mubr.f32.gmra.mrb[0].mxu0 %v332
        %v680 = vpop.f32.mrb[0].mxu0
        %v681 = vadd.f32 %v536, %v680
        %v682 = vpop.f32.mrb[0].mxu0
        %683 = vmatprep.mubr.f32.mxu0 %v337
        %684 = vmatmul.mubr.f32.gmra.mrb[0].mxu0 %v336
        %v685 = vpop.f32.mrb[0].mxu0
        %v686 = vadd.f32 %v541, %v685
        %v687 = vpop.f32.mrb[0].mxu0
        %688 = vmatprep.mubr.f32.mxu0 %v341
        %689 = vmatmul.mubr.f32.gmra.mrb[0].mxu0 %v340
        %v690 = vpop.f32.mrb[0].mxu0
        %v691 = vadd.f32 %v546, %v690
        %v692 = vpop.f32.mrb[0].mxu0
        %693 = vmatprep.mubr.f32.mxu0 %v345
        %694 = vmatmul.mubr.f32.gmra.mrb[0].mxu0 %v344
        %v695 = vpop.f32.mrb[0].mxu0
        %v696 = vadd.f32 %v551, %v695
        %v697 = vpop.f32.mrb[0].mxu0
        %698 = vmatprep.mubr.f32.mxu0 %v349
        %699 = vmatmul.mubr.f32.gmra.mrb[0].mxu0 %v348
        %v700 = vpop.f32.mrb[0].mxu0
        %v701 = vadd.f32 %v556, %v700
        %v702 = vpop.f32.mrb[0].mxu0
        %703 = vmatprep.mubr.f32.mxu0 %v353
        %704 = vmatmul.mubr.f32.gmra.mrb[0].mxu0 %v352
        %v705 = vpop.f32.mrb[0].mxu0
        %v706 = vadd.f32 %v561, %v705
        %v707 = vpop.f32.mrb[0].mxu0
        %708 = vmatprep.mubr.f32.mxu0 %v357
        %709 = vmatmul.mubr.f32.gmra.mrb[0].mxu0 %v356
        %v710 = vpop.f32.mrb[0].mxu0
        %v711 = vadd.f32 %v566, %v710
        %v712 = vpop.f32.mrb[0].mxu0
        %713 = vmatprep.mubr.f32.mxu0 %v361
        %714 = vmatmul.mubr.f32.gmra.mrb[0].mxu0 %v360
        %v715 = vpop.f32.mrb[0].mxu0
        %v716 = vadd.f32 %v571, %v715
        %v717 = vpop.f32.mrb[0].mxu0
        %718 = vmatprep.mubr.f32.mxu0 %v365
        %719 = vmatmul.mubr.f32.gmra.mrb[0].mxu0 %v364
        %v720 = vpop.f32.mrb[0].mxu0
        %v721 = vadd.f32 %v576, %v720
        %v722 = vpop.f32.mrb[0].mxu0
        %723 = vmatprep.mubr.f32.mxu0 %v369
        %724 = vmatmul.mubr.f32.gmra.mrb[0].mxu0 %v368
        %v725 = vpop.f32.mrb[0].mxu0
        %v726 = vadd.f32 %v581, %v725
        %v727 = vpop.f32.mrb[0].mxu0
        %728 = vmatprep.mubr.f32.mxu0 %v373
        %729 = vmatmul.mubr.f32.gmra.mrb[0].mxu0 %v372
        %v730 = vpop.f32.mrb[0].mxu0
        %v731 = vadd.f32 %v586, %v730
        %v732 = vpop.f32.mrb[0].mxu0
        %733 = vmatprep.mubr.f32.mxu0 %v377
        %734 = vmatmul.mubr.f32.gmra.mrb[0].mxu0 %v376
        %v735 = vpop.f32.mrb[0].mxu0
        %v736 = vadd.f32 %v591, %v735
        %v737 = vpop.f32.mrb[0].mxu0
        %738 = vdwg.mxu0
        %v739 = vmax.f32 %v661, 0.0
        %v740 = vmax.f32 %v666, 0.0
        %v741 = vmax.f32 %v671, 0.0
        %v742 = vmax.f32 %v676, 0.0
        %v743 = vmax.f32 %v681, 0.0
        %v744 = vmax.f32 %v686, 0.0
        %v745 = vmax.f32 %v691, 0.0
        %v746 = vmax.f32 %v696, 0.0
        %v747 = vmax.f32 %v701, 0.0
        %v748 = vmax.f32 %v706, 0.0
        %v749 = vmax.f32 %v711, 0.0
        %v750 = vmax.f32 %v716, 0.0
        %v751 = vmax.f32 %v721, 0.0
        %v752 = vmax.f32 %v726, 0.0
        %v753 = vmax.f32 %v731, 0.0
        %v754 = vmax.f32 %v736, 0.0
        %v755 = vld [vmem:[%s3] sm:$0xff]
        %v756 = vld [vmem:[%s3 + $0x8] sm:$0xff]
        %v757 = vld [vmem:[%s3 + $0x10] sm:$0xff]
        %v758 = vld [vmem:[%s3 + $0x18] sm:$0xff]
        %v759 = vld [vmem:[%s3 + $0x20] sm:$0xff]
        %v760 = vld [vmem:[%s3 + $0x28] sm:$0xff]
        %v761 = vld [vmem:[%s3 + $0x30] sm:$0xff]
        %v762 = vld [vmem:[%s3 + $0x38] sm:$0xff]
        %v763 = vld [vmem:[%s3 + $0x40] sm:$0xff]
        %v764 = vld [vmem:[%s3 + $0x48] sm:$0xff]
        %v765 = vld [vmem:[%s3 + $0x50] sm:$0xff]
        %v766 = vld [vmem:[%s3 + $0x58] sm:$0xff]
        %v767 = vld [vmem:[%s3 + $0x60] sm:$0xff]
        %v768 = vld [vmem:[%s3 + $0x68] sm:$0xff]
        %v769 = vld [vmem:[%s3 + $0x70] sm:$0xff]
        %v770 = vld [vmem:[%s3 + $0x78] sm:$0xff]
        %v771 = vld [vmem:[%s4] sm:$0xff]
        %v772 = vld [vmem:[%s4 + $0x8] sm:$0xff]
        %v773 = vld [vmem:[%s4 + $0x10] sm:$0xff]
        %v774 = vld [vmem:[%s4 + $0x18] sm:$0xff]
        %v775 = vld [vmem:[%s4 + $0x20] sm:$0xff]
        %v776 = vld [vmem:[%s4 + $0x28] sm:$0xff]
        %v777 = vld [vmem:[%s4 + $0x30] sm:$0xff]
        %v778 = vld [vmem:[%s4 + $0x38] sm:$0xff]
        %v779 = vld [vmem:[%s4 + $0x40] sm:$0xff]
        %v780 = vld [vmem:[%s4 + $0x48] sm:$0xff]
        %v781 = vld [vmem:[%s4 + $0x50] sm:$0xff]
        %v782 = vld [vmem:[%s4 + $0x58] sm:$0xff]
        %v783 = vld [vmem:[%s4 + $0x60] sm:$0xff]
        %v784 = vld [vmem:[%s4 + $0x68] sm:$0xff]
        %v785 = vld [vmem:[%s4 + $0x70] sm:$0xff]
        %v786 = vld [vmem:[%s4 + $0x78] sm:$0xff]
        %788 = vset.pattern.permute.xlu0 0
        %789 = vperm.xlu0 %788, %v771
        %v790 = vpop.permute.xlu0 %789
        %793 = vset.pattern.permute.xlu0 0
        %794 = vperm.xlu0 %793, %v772
        %v795 = vpop.permute.xlu0 %794
        %798 = vset.pattern.permute.xlu0 0
        %799 = vperm.xlu0 %798, %v773
        %v800 = vpop.permute.xlu0 %799
        %803 = vset.pattern.permute.xlu0 0
        %804 = vperm.xlu0 %803, %v774
        %v805 = vpop.permute.xlu0 %804
        %808 = vset.pattern.permute.xlu0 0
        %809 = vperm.xlu0 %808, %v775
        %v810 = vpop.permute.xlu0 %809
        %813 = vset.pattern.permute.xlu0 0
        %814 = vperm.xlu0 %813, %v776
        %v815 = vpop.permute.xlu0 %814
        %818 = vset.pattern.permute.xlu0 0
        %819 = vperm.xlu0 %818, %v777
        %v820 = vpop.permute.xlu0 %819
        %823 = vset.pattern.permute.xlu0 0
        %824 = vperm.xlu0 %823, %v778
        %v825 = vpop.permute.xlu0 %824
        %828 = vset.pattern.permute.xlu0 0
        %829 = vperm.xlu0 %828, %v779
        %v830 = vpop.permute.xlu0 %829
        %833 = vset.pattern.permute.xlu0 0
        %834 = vperm.xlu0 %833, %v780
        %v835 = vpop.permute.xlu0 %834
        %838 = vset.pattern.permute.xlu0 0
        %839 = vperm.xlu0 %838, %v781
        %v840 = vpop.permute.xlu0 %839
        %843 = vset.pattern.permute.xlu0 0
        %844 = vperm.xlu0 %843, %v782
        %v845 = vpop.permute.xlu0 %844
        %848 = vset.pattern.permute.xlu0 0
        %849 = vperm.xlu0 %848, %v783
        %v850 = vpop.permute.xlu0 %849
        %853 = vset.pattern.permute.xlu0 0
        %854 = vperm.xlu0 %853, %v784
        %v855 = vpop.permute.xlu0 %854
        %858 = vset.pattern.permute.xlu0 0
        %859 = vperm.xlu0 %858, %v785
        %v860 = vpop.permute.xlu0 %859
        %863 = vset.pattern.permute.xlu0 0
        %864 = vperm.xlu0 %863, %v786
        %v865 = vpop.permute.xlu0 %864
        %867 = vmatprep.subr.mxu0 0.0
        %868 = vmatpush1.xpose.msra.mxu0 %v739
        %869 = vmatprep.subr.mxu0 0.0
        %870 = vmatpush1.xpose.msra.mxu0 %v740
        %871 = vmatprep.subr.mxu0 0.0
        %872 = vmatpush1.xpose.msra.mxu0 %v741
        %873 = vmatprep.subr.mxu0 0.0
        %874 = vmatpush1.xpose.msra.mxu0 %v742
        %875 = vmatprep.subr.mxu0 0.0
        %876 = vmatpush1.xpose.msra.mxu0 %v743
        %877 = vmatprep.subr.mxu0 0.0
        %878 = vmatpush1.xpose.msra.mxu0 %v744
        %879 = vmatprep.subr.mxu0 0.0
        %880 = vmatpush1.xpose.msra.mxu0 %v745
        %881 = vmatprep.subr.mxu0 0.0
        %882 = vmatpush1.xpose.msra.mxu0 %v746
        %883 = vmatprep.subr.mxu0 0.0
        %884 = vmatpush1.xpose.msra.mxu0 %v747
        %885 = vmatprep.subr.mxu0 0.0
        %886 = vmatpush1.xpose.msra.mxu0 %v748
        %887 = vmatprep.subr.mxu0 0.0
        %888 = vmatpush1.xpose.msra.mxu0 %v749
        %889 = vmatprep.subr.mxu0 0.0
        %890 = vmatpush1.xpose.msra.mxu0 %v750
        %891 = vmatprep.subr.mxu0 0.0
        %892 = vmatpush1.xpose.msra.mxu0 %v751
        %893 = vmatprep.subr.mxu0 0.0
        %894 = vmatpush1.xpose.msra.mxu0 %v752
        %895 = vmatprep.subr.mxu0 0.0
        %896 = vmatpush1.xpose.msra.mxu0 %v753
        %897 = vmatprep.subr.mxu0 0.0
        %898 = vmatpush1.xpose.msra.mxu0 %v754
        %899 = vmatprep.subr.mxu0 0.0
        %900 = vmatpush1.xpose.msra.mxu0 0.0
        %901 = vmatprep.subr.mxu0 0.0
        %902 = vmatpush1.xpose.msra.mxu0 0.0
        %903 = vmatprep.subr.mxu0 0.0
        %904 = vmatpush1.xpose.msra.mxu0 0.0
        %905 = vmatprep.subr.mxu0 0.0
        %906 = vmatpush1.xpose.msra.mxu0 0.0
        %907 = vmatprep.subr.mxu0 0.0
        %908 = vmatpush1.xpose.msra.mxu0 0.0
        %909 = vmatprep.subr.mxu0 0.0
        %910 = vmatpush1.xpose.msra.mxu0 0.0
        %911 = vmatprep.subr.mxu0 0.0
        %912 = vmatpush1.xpose.msra.mxu0 0.0
        %913 = vmatprep.subr.mxu0 0.0
        %914 = vmatpush1.xpose.msra.mxu0 0.0
        %915 = vmatprep.subr.mxu0 0.0
        %916 = vmatpush1.xpose.msra.mxu0 0.0
        %917 = vmatprep.subr.mxu0 0.0
        %918 = vmatpush1.xpose.msra.mxu0 0.0
        %919 = vmatprep.subr.mxu0 0.0
        %920 = vmatpush1.xpose.msra.mxu0 0.0
        %921 = vmatprep.subr.mxu0 0.0
        %922 = vmatpush1.xpose.msra.mxu0 0.0
        %923 = vmatprep.subr.mxu0 0.0
        %924 = vmatpush1.xpose.msra.mxu0 0.0
        %925 = vmatprep.subr.mxu0 0.0
        %926 = vmatpush1.xpose.msra.mxu0 0.0
        %927 = vmatprep.subr.mxu0 0.0
        %928 = vmatpush1.xpose.msra.mxu0 0.0
        %929 = vmatprep.subr.mxu0 0.0
        %930 = vmatpush1.xpose.msra.mxu0 0.0
        %931 = vmatprep.mubr.f32.mxu0 0.0
        %932 = vmatmul.mubr.f32.gmra.mrb[0].mxu0 %v755
        %v933 = vpop.f32.mrb[0].mxu0
        %v934 = vadd.f32 %v790, %v933
        %v935 = vpop.f32.mrb[0].mxu0
        %936 = vmatprep.mubr.f32.mxu0 0.0
        %937 = vmatmul.mubr.f32.gmra.mrb[0].mxu0 %v756
        %v938 = vpop.f32.mrb[0].mxu0
        %v939 = vadd.f32 %v795, %v938
        %v940 = vpop.f32.mrb[0].mxu0
        %941 = vmatprep.mubr.f32.mxu0 0.0
        %942 = vmatmul.mubr.f32.gmra.mrb[0].mxu0 %v757
        %v943 = vpop.f32.mrb[0].mxu0
        %v944 = vadd.f32 %v800, %v943
        %v945 = vpop.f32.mrb[0].mxu0
        %946 = vmatprep.mubr.f32.mxu0 0.0
        %947 = vmatmul.mubr.f32.gmra.mrb[0].mxu0 %v758
        %v948 = vpop.f32.mrb[0].mxu0
        %v949 = vadd.f32 %v805, %v948
        %v950 = vpop.f32.mrb[0].mxu0
        %951 = vmatprep.mubr.f32.mxu0 0.0
        %952 = vmatmul.mubr.f32.gmra.mrb[0].mxu0 %v759
        %v953 = vpop.f32.mrb[0].mxu0
        %v954 = vadd.f32 %v810, %v953
        %v955 = vpop.f32.mrb[0].mxu0
        %956 = vmatprep.mubr.f32.mxu0 0.0
        %957 = vmatmul.mubr.f32.gmra.mrb[0].mxu0 %v760
        %v958 = vpop.f32.mrb[0].mxu0
        %v959 = vadd.f32 %v815, %v958
        %v960 = vpop.f32.mrb[0].mxu0
        %961 = vmatprep.mubr.f32.mxu0 0.0
        %962 = vmatmul.mubr.f32.gmra.mrb[0].mxu0 %v761
        %v963 = vpop.f32.mrb[0].mxu0
        %v964 = vadd.f32 %v820, %v963
        %v965 = vpop.f32.mrb[0].mxu0
        %966 = vmatprep.mubr.f32.mxu0 0.0
        %967 = vmatmul.mubr.f32.gmra.mrb[0].mxu0 %v762
        %v968 = vpop.f32.mrb[0].mxu0
        %v969 = vadd.f32 %v825, %v968
        %v970 = vpop.f32.mrb[0].mxu0
        %971 = vmatprep.mubr.f32.mxu0 0.0
        %972 = vmatmul.mubr.f32.gmra.mrb[0].mxu0 %v763
        %v973 = vpop.f32.mrb[0].mxu0
        %v974 = vadd.f32 %v830, %v973
        %v975 = vpop.f32.mrb[0].mxu0
        %976 = vmatprep.mubr.f32.mxu0 0.0
        %977 = vmatmul.mubr.f32.gmra.mrb[0].mxu0 %v764
        %v978 = vpop.f32.mrb[0].mxu0
        %v979 = vadd.f32 %v835, %v978
        %v980 = vpop.f32.mrb[0].mxu0
        %981 = vmatprep.mubr.f32.mxu0 0.0
        %982 = vmatmul.mubr.f32.gmra.mrb[0].mxu0 %v765
        %v983 = vpop.f32.mrb[0].mxu0
        %v984 = vadd.f32 %v840, %v983
        %v985 = vpop.f32.mrb[0].mxu0
        %986 = vmatprep.mubr.f32.mxu0 0.0
        %987 = vmatmul.mubr.f32.gmra.mrb[0].mxu0 %v766
        %v988 = vpop.f32.mrb[0].mxu0
        %v989 = vadd.f32 %v845, %v988
        %v990 = vpop.f32.mrb[0].mxu0
        %991 = vmatprep.mubr.f32.mxu0 0.0
        %992 = vmatmul.mubr.f32.gmra.mrb[0].mxu0 %v767
        %v993 = vpop.f32.mrb[0].mxu0
        %v994 = vadd.f32 %v850, %v993
        %v995 = vpop.f32.mrb[0].mxu0
        %996 = vmatprep.mubr.f32.mxu0 0.0
        %997 = vmatmul.mubr.f32.gmra.mrb[0].mxu0 %v768
        %v998 = vpop.f32.mrb[0].mxu0
        %v999 = vadd.f32 %v855, %v998
        %v1000 = vpop.f32.mrb[0].mxu0
        %1001 = vmatprep.mubr.f32.mxu0 0.0
        %1002 = vmatmul.mubr.f32.gmra.mrb[0].mxu0 %v769
        %v1003 = vpop.f32.mrb[0].mxu0
        %v1004 = vadd.f32 %v860, %v1003
        %v1005 = vpop.f32.mrb[0].mxu0
        %1006 = vmatprep.mubr.f32.mxu0 0.0
        %1007 = vmatmul.mubr.f32.gmra.mrb[0].mxu0 %v770
        %v1008 = vpop.f32.mrb[0].mxu0
        %v1009 = vadd.f32 %v865, %v1008
        %v1010 = vpop.f32.mrb[0].mxu0
        %1011 = vdwg.mxu0
        %v1012 = vmax.f32 %v934, 0.0
        %v1013 = vmax.f32 %v939, 0.0
        %v1014 = vmax.f32 %v944, 0.0
        %v1015 = vmax.f32 %v949, 0.0
        %v1016 = vmax.f32 %v954, 0.0
        %v1017 = vmax.f32 %v959, 0.0
        %v1018 = vmax.f32 %v964, 0.0
        %v1019 = vmax.f32 %v969, 0.0
        %v1020 = vmax.f32 %v974, 0.0
        %v1021 = vmax.f32 %v979, 0.0
        %v1022 = vmax.f32 %v984, 0.0
        %v1023 = vmax.f32 %v989, 0.0
        %v1024 = vmax.f32 %v994, 0.0
        %v1025 = vmax.f32 %v999, 0.0
        %v1026 = vmax.f32 %v1004, 0.0
        %v1027 = vmax.f32 %v1009, 0.0
        %v1028 = vld [vmem:[%s5] sm:$0x1]
        %s1029 = sld [smem:[#allocation2]]
        %v1030 = vstv %s1029
        %1031 = vmatprep.subr.mxu0 0.0
        %1032 = vmatpush1.msra.mxu0 %v1012
        %1033 = vmatprep.subr.mxu0 0.0
        %1034 = vmatpush1.msra.mxu0 %v1013
        %1035 = vmatprep.subr.mxu0 0.0
        %1036 = vmatpush1.msra.mxu0 %v1014
        %1037 = vmatprep.subr.mxu0 0.0
        %1038 = vmatpush1.msra.mxu0 %v1015
        %1039 = vmatprep.subr.mxu0 0.0
        %1040 = vmatpush1.msra.mxu0 %v1016
        %1041 = vmatprep.subr.mxu0 0.0
        %1042 = vmatpush1.msra.mxu0 %v1017
        %1043 = vmatprep.subr.mxu0 0.0
        %1044 = vmatpush1.msra.mxu0 %v1018
        %1045 = vmatprep.subr.mxu0 0.0
        %1046 = vmatpush1.msra.mxu0 %v1019
        %1047 = vmatprep.subr.mxu0 0.0
        %1048 = vmatpush1.msra.mxu0 %v1020
        %1049 = vmatprep.subr.mxu0 0.0
        %1050 = vmatpush1.msra.mxu0 %v1021
        %1051 = vmatprep.subr.mxu0 0.0
        %1052 = vmatpush1.msra.mxu0 %v1022
        %1053 = vmatprep.subr.mxu0 0.0
        %1054 = vmatpush1.msra.mxu0 %v1023
        %1055 = vmatprep.subr.mxu0 0.0
        %1056 = vmatpush1.msra.mxu0 %v1024
        %1057 = vmatprep.subr.mxu0 0.0
        %1058 = vmatpush1.msra.mxu0 %v1025
        %1059 = vmatprep.subr.mxu0 0.0
        %1060 = vmatpush1.msra.mxu0 %v1026
        %1061 = vmatprep.subr.mxu0 0.0
        %1062 = vmatpush1.msra.mxu0 %v1027
        %1063 = vmatprep.subr.mxu0 0.0
        %1064 = vmatpush1.msra.mxu0 0.0
        %1065 = vmatprep.subr.mxu0 0.0
        %1066 = vmatpush1.msra.mxu0 0.0
        %1067 = vmatprep.subr.mxu0 0.0
        %1068 = vmatpush1.msra.mxu0 0.0
        %1069 = vmatprep.subr.mxu0 0.0
        %1070 = vmatpush1.msra.mxu0 0.0
        %1071 = vmatprep.subr.mxu0 0.0
        %1072 = vmatpush1.msra.mxu0 0.0
        %1073 = vmatprep.subr.mxu0 0.0
        %1074 = vmatpush1.msra.mxu0 0.0
        %1075 = vmatprep.subr.mxu0 0.0
        %1076 = vmatpush1.msra.mxu0 0.0
        %1077 = vmatprep.subr.mxu0 0.0
        %1078 = vmatpush1.msra.mxu0 0.0
        %1079 = vmatprep.subr.mxu0 0.0
        %1080 = vmatpush1.msra.mxu0 0.0
        %1081 = vmatprep.subr.mxu0 0.0
        %1082 = vmatpush1.msra.mxu0 0.0
        %1083 = vmatprep.subr.mxu0 0.0
        %1084 = vmatpush1.msra.mxu0 0.0
        %1085 = vmatprep.subr.mxu0 0.0
        %1086 = vmatpush1.msra.mxu0 0.0
        %1087 = vmatprep.subr.mxu0 0.0
        %1088 = vmatpush1.msra.mxu0 0.0
        %1089 = vmatprep.subr.mxu0 0.0
        %1090 = vmatpush1.msra.mxu0 0.0
        %1091 = vmatprep.subr.mxu0 0.0
        %1092 = vmatpush1.msra.mxu0 0.0
        %1093 = vmatprep.subr.mxu0 0.0
        %1094 = vmatpush1.msra.mxu0 0.0
        %1095 = vmatprep.mubr.f32.mxu0 0.0
        %1096 = vmatmul.mubr.f32.gmra.mrb[0].mxu0 %v1028
        %v1097 = vpop.f32.mrb[0].mxu0
        %v1098 = vadd.f32 %v1030, %v1097
        %v1099 = vpop.f32.mrb[0].mxu0
        %1100 = vdwg.mxu0
        %v1101 = vxor.u32 %v1098, 2147483648
        %v1102 = vmul.f32 %v1101, 1.442695
        %v1103 = vpow.pop %v1102
        %v1104 = vadd.f32 %v1103, 1.0
        %v1105 = vrcp.pop %v1104
        %v1106 = vmul.f32 1.0, %v1105
        %1107 = vst [vmem:[%s312] sm:$0x1] %v1106
        %s1108 = sand.u32 %s186, 1
        %s1109 = scalar_lea.sflag [#allocation5], %s1108
        %s1110 = sand.u32 %s186, 1
        %s1111 = scalar_lea.vmem [#allocation8], %s1110
        // Predicated region
        $region57: #{tpu_custom_call.1} parent=47 // pred_check
          %p1112 = pneg %p196
        $region58: #{tpu_custom_call.1} parent=47 // pred_check_branch
          %1114 = sbr.rel (%p1112) target = $region60
        $region59: #{tpu_custom_call.1} parent=47 // pred_region
          %s1116 = ssub.s32 16, 16
          %1117 = vsyncadd %s1109, %s1116
          %s1118 = smul.addr %s26, 16
          %s1119 = scalar_lea.hbm %s7, %s1118
          %s1121 = sshll.u32 %s1111, 4
          %s1122 = int_to_ptr.vmem [resolvable:$true] %s1121
          %1124 = dma.vmem_to_hbm [thread:$0]  %s1122, 16, %s1119, %s1109
        $region60: #{tpu_custom_call.1} parent=47 // pred_fallthru
          _
      $region48: #{tpu_custom_call.1} parent=5 // pred_fallthru
        _
      %p1125 = scmp.le.s32.totalorder 2, %s21
      // Predicated region
      $region61: #{tpu_custom_call.1} parent=5 // pred_check
        %p1126 = pneg %p1125
      $region62: #{tpu_custom_call.1} parent=5 // pred_check_branch
        %1128 = sbr.rel (%p1126) target = $region64
      $region63: #{tpu_custom_call.1} parent=5 // pred_region
        %s1129 = ssub.s32 %s21, 2
        // Predicated region
        $region65: #{tpu_custom_call.1} parent=63 // pred_check
          %p1130 = pneg %p202
        $region66: #{tpu_custom_call.1} parent=63 // pred_check_branch
          %1132 = sbr.rel (%p1130) target = $region68
        $region67: #{tpu_custom_call.1} parent=63 // pred_region
          %s1133 = sand.u32 %s187, 1
          %s1134 = scalar_lea.sflag [#allocation5], %s1133
          %s1135 = sand.u32 %s187, 1
          %s1136 = scalar_lea.vmem [#allocation8], %s1135
          %1137 = dma.done %s1134, 16
        $region68: #{tpu_custom_call.1} parent=63 // pred_fallthru
          _
      $region64: #{tpu_custom_call.1} parent=5 // pred_fallthru
        _
    $region6: #{tpu_custom_call.1} parent=1 // loop_footer
      %s25 = sadd.s32 1, %s21
    $region7: #{tpu_custom_call.1} parent=1 // loop_footer_branch
      %20 = sbr.rel target = $region3
    $region8: #{tpu_custom_call.1} parent=1 // loop_exit
      _
    %1138 = vsyncpa [#allocation4], 1
    %s1139 = scalar_lea.sflag [#allocation4], 1
    %1140 = vsyncpa %s1139, 1
    %1141 = vsyncpa [#allocation7], 1
    %1142 = vsyncpa [#allocation5], 1
    %s1143 = scalar_lea.sflag [#allocation5], 1
    %1144 = vsyncpa %s1143, 1

</llo_original>
